<compile_context>
chip_gen: v5e
topology: v5e:2x2
jax: 0.10.0
libtpu: 0.0.40
codegen_flags: <defaults>
</compile_context>

<pallas_src>
import functools

import jax
import jax.numpy as jnp
from jax.experimental import pallas as pl
from jax.experimental.pallas import tpu as pltpu  # noqa: F401  (kept for compiler_params if shapes grow)


def _conv_flat_kernel(x_ref, w_ref, b_ref, o_ref, *, tap_offsets, l_out, n_batch):
    """Single invocation, whole batch.

    x_ref: (N, CI_pad, Lp)        zero-padded images, spatial flattened onto the lane axis
    w_ref: (CO, KH*KW*CI_pad)     packed dense weights (single tile)
    b_ref: (CO, 1)                bias
    o_ref: (N, CO, Lpad)          flat stride-1 output (rows of width Wp; lane-padded)
    """
    w = w_ref[...]
    b = b_ref[...].astype(jnp.float32)
    for n in range(n_batch):                                   # static unroll over images
        # In-register im2col: the (kh, kw) window of the padded image is just a flat
        # lane-shifted slice starting at kh*Wp + kw (zero padding already in the data,
        # so no masking); each tap block is a full 8-sublane slab.
        patch = jnp.concatenate(
            [x_ref[n, :, off:off + l_out] for off in tap_offsets], axis=0)
        # Single folded MXU matmul per image: (CO, K) @ (K, Lpad) -> (CO, Lpad), f32 acc.
        acc = jnp.dot(w, patch, preferred_element_type=jnp.float32)
        o_ref[n, :, :] = (acc + b).astype(o_ref.dtype)


def conv2d_pallas(x_nchw, w_packed, bias, *, ksize, stride, padding):
    """Dense conv (group structure encoded by zeros in w_packed), PyTorch semantics.

    x_nchw:   (N, CI, H, W)
    w_packed: (CO, KH*KW*CI_pad)  packed as (kh, kw, ci) with ci fastest, ci padded to 8
    bias:     (CO,)
    returns:  (N, CO, Ho, Wo)
    """
    N, CI, H, W = x_nchw.shape
    CO, k_dim = w_packed.shape
    CI_pad = -(-CI // 8) * 8                                   # sublane-align channels
    assert k_dim == ksize * ksize * CI_pad

    Hp, Wp = H + 2 * padding, W + 2 * padding
    Ho1, Wo1 = Hp - ksize + 1, Wp - ksize + 1                  # stride-1 output extent
    L = Ho1 * Wp                                               # flat output length (Wp-wide rows)
    Lpad = -(-L // 128) * 128                                  # lane-dense output slab

    # Enough extra zero rows at the bottom so that every flat window slice
    # [off, off + Lpad) stays in bounds for the largest tap offset.
    max_off = (ksize - 1) * Wp + (ksize - 1)
    Hp_ext = max(-(-(max_off + Lpad) // Wp), Hp)
    Lp = Hp_ext * Wp

    # One pad folds: channel padding to CI_pad, spatial zero padding, extra bottom rows.
    # (NCHW order preserved -> no transpose; free reshape to the flat lane layout.)
    xp = jnp.pad(x_nchw, ((0, 0), (0, CI_pad - CI),
                          (padding, Hp_ext - H - padding), (padding, padding)))
    xf = xp.reshape(N, CI_pad, Lp)

    tap_offsets = tuple(r * Wp + c for r in range(ksize) for c in range(ksize))
    kern = functools.partial(_conv_flat_kernel, tap_offsets=tap_offsets,
                             l_out=Lpad, n_batch=N)

    # No grid: whole (tiny) problem in one step; all operands fit VMEM trivially (~60 KB).
    yf = pl.pallas_call(
        kern,
        out_shape=jax.ShapeDtypeStruct((N, CO, Lpad), x_nchw.dtype),
    )(xf, w_packed, bias.reshape(CO, 1))

    # Drop lane padding and the (KW-1) junk columns each flat row carries (tiny slice).
    y = yf[:, :, :L].reshape(N, CO, Ho1, Wp)[:, :, :, :Wo1]
    if stride > 1:
        # TODO(synk): for stride>1 build the patch with strided lane slices in-kernel
        # (pl.ds(off, size, stride)) instead of computing stride-1 and subsampling here.
        y = y[:, :, ::stride, ::stride]
    return y


def densify_grouped_weight(w_oihw, groups):
    """PyTorch grouped weight (CO, CI//G, KH, KW) -> dense (CO, CI, KH, KW)."""
    CO, CIg, KH, KW = w_oihw.shape
    CI = CIg * groups
    COg = CO // groups
    dense = jnp.zeros((CO, CI, KH, KW), w_oihw.dtype)
    for g in range(groups):
        dense = dense.at[g * COg:(g + 1) * COg, g * CIg:(g + 1) * CIg].set(
            w_oihw[g * COg:(g + 1) * COg])
    return dense


class Seq1Pallas:
    """JAX/Pallas equivalent of the PyTorch Seq1 module (branch convs + channel concat)."""

    def __init__(self, in_channels, out_channels, kernel_size, stride, bias,
                 padding=1, args=None, key=None):
        sf = args['split_factor']
        co_each = out_channels // sf
        self.stride = stride
        self.padding = padding
        self.ksize = kernel_size
        self.groups = list(args['groups'])

        keys = jax.random.split(key, 2 * sf)
        self.raw_ws, self.raw_bs, dense_ws = [], [], []
        for i in range(sf):
            g = self.groups[i]
            fan_in = (in_channels // g) * kernel_size * kernel_size
            bound = 1.0 / (fan_in ** 0.5)                       # PyTorch Conv2d default init
            w = jax.random.uniform(keys[2 * i],
                                   (co_each, in_channels // g, kernel_size, kernel_size),
                                   jnp.float32, -bound, bound)
            b = (jax.random.uniform(keys[2 * i + 1], (co_each,), jnp.float32, -bound, bound)
                 if bias else jnp.zeros((co_each,), jnp.float32))
            self.raw_ws.append(w)
            self.raw_bs.append(b)
            dense_ws.append(densify_grouped_weight(w, g))

        # Concatenating along CO makes the single dense conv equal to
        # torch.cat([conv_i(x) for i], dim=1).  (At realistic channel counts one would
        # run per-group matmuls instead of densifying with zeros; free at CI=4/CO=8.)
        w_dense = jnp.concatenate(dense_ws, axis=0)             # (CO_total, CI, KH, KW)
        CO_total, CI, KH, KW = w_dense.shape
        ci_pad = -(-CI // 8) * 8
        # Pack into one dense (CO, KH*KW*CI_pad) tile matching the kernel's patch-row
        # order (taps kh-major, then kw, with ci fastest; ci zero-padded to 8).
        w_t = jnp.transpose(w_dense, (0, 2, 3, 1))              # (CO, KH, KW, CI)
        w_t = jnp.pad(w_t, ((0, 0), (0, 0), (0, 0), (0, ci_pad - CI)))
        self.w_packed = w_t.reshape(CO_total, KH * KW * ci_pad)
        self.b = jnp.concatenate(self.raw_bs, axis=0)           # (CO_total,)

    def __call__(self, x_nchw):
        return conv2d_pallas(x_nchw, self.w_packed, self.b,
                             ksize=self.ksize, stride=self.stride, padding=self.padding)


def _reference(model, x):
    """Pure-JAX reference using lax.conv_general_dilated (mirrors PyTorch semantics)."""
    outs = []
    for w, b, g in zip(model.raw_ws, model.raw_bs, model.groups):
        y = jax.lax.conv_general_dilated(
            x, w, window_strides=(model.stride, model.stride),
            padding=[(model.padding, model.padding)] * 2,
            dimension_numbers=('NCHW', 'OIHW', 'NCHW'),
            feature_group_count=g)
        outs.append(y + b.reshape(1, -1, 1, 1))
    return jnp.concatenate(outs, axis=1)


if __name__ == "__main__":
    key = jax.random.PRNGKey(0)
    kx, kp = jax.random.split(key)

    # Small shapes consistent with the module.
    N, CI, H, W = 2, 4, 16, 16
    out_channels, ksize, stride, padding = 8, 3, 1, 1
    args = {'split_factor': 2, 'groups': [1, 2]}

    model = Seq1Pallas(CI, out_channels, ksize, stride, bias=True,
                       padding=padding, args=args, key=kp)
    x = jax.random.normal(kx, (N, CI, H, W), jnp.float32)

    y = model(x)
    jax.block_until_ready(y)

    assert y.shape == (N, out_channels, H, W), y.shape
    y_ref = _reference(model, x)
    assert jnp.allclose(y, y_ref, atol=2e-4, rtol=2e-4), "mismatch vs reference conv"

    print("KERNEL_OK")
</pallas_src>

<mosaic_0001>
module attributes {stable_mosaic.version = 11 : i64} {
  func.func @_conv_flat_kernel(%arg0: memref<2x8x432xf32, #tpu.memory_space<vmem>>, %arg1: memref<8x72xf32, #tpu.memory_space<vmem>>, %arg2: memref<8x1xf32, #tpu.memory_space<vmem>>, %arg3: memref<2x8x384xf32, #tpu.memory_space<vmem>>) attributes {dimension_semantics = [], scalar_prefetch = 0 : i64, scratch_operands = 0 : i64, tpu.core_type = #tpu.core_type<tc>} {
    %c0 = arith.constant 0 : index
    %c0_0 = arith.constant 0 : index
    %0 = vector.load %arg1[%c0, %c0_0] : memref<8x72xf32, #tpu.memory_space<vmem>>, vector<8x72xf32>
    %c0_1 = arith.constant 0 : index
    %c0_2 = arith.constant 0 : index
    %1 = vector.load %arg2[%c0_1, %c0_2] : memref<8x1xf32, #tpu.memory_space<vmem>>, vector<8x1xf32>
    %c0_3 = arith.constant 0 : index
    %c0_4 = arith.constant 0 : index
    %c0_5 = arith.constant 0 : index
    %2 = vector.load %arg0[%c0_3, %c0_4, %c0_5] : memref<2x8x432xf32, #tpu.memory_space<vmem>>, vector<1x8x384xf32>
    %3 = vector.shape_cast %2 : vector<1x8x384xf32> to vector<8x384xf32>
    %c0_6 = arith.constant 0 : index
    %c0_7 = arith.constant 0 : index
    %c1 = arith.constant 1 : index
    %4 = vector.load %arg0[%c0_6, %c0_7, %c1] : memref<2x8x432xf32, #tpu.memory_space<vmem>>, vector<1x8x384xf32>
    %5 = vector.shape_cast %4 : vector<1x8x384xf32> to vector<8x384xf32>
    %c0_8 = arith.constant 0 : index
    %c0_9 = arith.constant 0 : index
    %c2 = arith.constant 2 : index
    %6 = vector.load %arg0[%c0_8, %c0_9, %c2] : memref<2x8x432xf32, #tpu.memory_space<vmem>>, vector<1x8x384xf32>
    %7 = vector.shape_cast %6 : vector<1x8x384xf32> to vector<8x384xf32>
    %c0_10 = arith.constant 0 : index
    %c0_11 = arith.constant 0 : index
    %c18 = arith.constant 18 : index
    %8 = vector.load %arg0[%c0_10, %c0_11, %c18] : memref<2x8x432xf32, #tpu.memory_space<vmem>>, vector<1x8x384xf32>
    %9 = vector.shape_cast %8 : vector<1x8x384xf32> to vector<8x384xf32>
    %c0_12 = arith.constant 0 : index
    %c0_13 = arith.constant 0 : index
    %c19 = arith.constant 19 : index
    %10 = vector.load %arg0[%c0_12, %c0_13, %c19] : memref<2x8x432xf32, #tpu.memory_space<vmem>>, vector<1x8x384xf32>
    %11 = vector.shape_cast %10 : vector<1x8x384xf32> to vector<8x384xf32>
    %c0_14 = arith.constant 0 : index
    %c0_15 = arith.constant 0 : index
    %c20 = arith.constant 20 : index
    %12 = vector.load %arg0[%c0_14, %c0_15, %c20] : memref<2x8x432xf32, #tpu.memory_space<vmem>>, vector<1x8x384xf32>
    %13 = vector.shape_cast %12 : vector<1x8x384xf32> to vector<8x384xf32>
    %c0_16 = arith.constant 0 : index
    %c0_17 = arith.constant 0 : index
    %c36 = arith.constant 36 : index
    %14 = vector.load %arg0[%c0_16, %c0_17, %c36] : memref<2x8x432xf32, #tpu.memory_space<vmem>>, vector<1x8x384xf32>
    %15 = vector.shape_cast %14 : vector<1x8x384xf32> to vector<8x384xf32>
    %c0_18 = arith.constant 0 : index
    %c0_19 = arith.constant 0 : index
    %c37 = arith.constant 37 : index
    %16 = vector.load %arg0[%c0_18, %c0_19, %c37] : memref<2x8x432xf32, #tpu.memory_space<vmem>>, vector<1x8x384xf32>
    %17 = vector.shape_cast %16 : vector<1x8x384xf32> to vector<8x384xf32>
    %c0_20 = arith.constant 0 : index
    %c0_21 = arith.constant 0 : index
    %c38 = arith.constant 38 : index
    %18 = vector.load %arg0[%c0_20, %c0_21, %c38] : memref<2x8x432xf32, #tpu.memory_space<vmem>>, vector<1x8x384xf32>
    %19 = vector.shape_cast %18 : vector<1x8x384xf32> to vector<8x384xf32>
    %20 = tpu.concatenate %3, %5, %7, %9, %11, %13, %15, %17, %19 in 0 : vector<8x384xf32>, vector<8x384xf32>, vector<8x384xf32>, vector<8x384xf32>, vector<8x384xf32>, vector<8x384xf32>, vector<8x384xf32>, vector<8x384xf32>, vector<8x384xf32> -> vector<72x384xf32>
    %cst = arith.constant dense<0.000000e+00> : vector<8x384xf32>
    %21 = tpu.matmul %0, %20, %cst {dimension_numbers = #tpu.dot_dimension_numbers<[1], [0], [0], [1], [0, 0, 1, 1], [], []>} : vector<8x72xf32>, vector<72x384xf32>, vector<8x384xf32> -> vector<8x384xf32>
    %22 = vector.broadcast %1 : vector<8x1xf32> to vector<8x384xf32>
    %23 = arith.addf %21, %22 : vector<8x384xf32>
    %c0_22 = arith.constant 0 : index
    %c0_23 = arith.constant 0 : index
    %c0_24 = arith.constant 0 : index
    %24 = vector.load %arg3[%c0_22, %c0_23, %c0_24] : memref<2x8x384xf32, #tpu.memory_space<vmem>>, vector<1x8x384xf32>
    %25 = vector.shape_cast %24 : vector<1x8x384xf32> to vector<8x384xf32>
    %26 = vector.shape_cast %23 : vector<8x384xf32> to vector<1x8x384xf32>
    tpu.vector_store %arg3[%c0_22, %c0_23, %c0_24], %26 {strides = array<i32>} : memref<2x8x384xf32, #tpu.memory_space<vmem>>, vector<1x8x384xf32>,
    %c1_25 = arith.constant 1 : index
    %c0_26 = arith.constant 0 : index
    %c0_27 = arith.constant 0 : index
    %27 = vector.load %arg0[%c1_25, %c0_26, %c0_27] : memref<2x8x432xf32, #tpu.memory_space<vmem>>, vector<1x8x384xf32>
    %28 = vector.shape_cast %27 : vector<1x8x384xf32> to vector<8x384xf32>
    %c1_28 = arith.constant 1 : index
    %c0_29 = arith.constant 0 : index
    %c1_30 = arith.constant 1 : index
    %29 = vector.load %arg0[%c1_28, %c0_29, %c1_30] : memref<2x8x432xf32, #tpu.memory_space<vmem>>, vector<1x8x384xf32>
    %30 = vector.shape_cast %29 : vector<1x8x384xf32> to vector<8x384xf32>
    %c1_31 = arith.constant 1 : index
    %c0_32 = arith.constant 0 : index
    %c2_33 = arith.constant 2 : index
    %31 = vector.load %arg0[%c1_31, %c0_32, %c2_33] : memref<2x8x432xf32, #tpu.memory_space<vmem>>, vector<1x8x384xf32>
    %32 = vector.shape_cast %31 : vector<1x8x384xf32> to vector<8x384xf32>
    %c1_34 = arith.constant 1 : index
    %c0_35 = arith.constant 0 : index
    %c18_36 = arith.constant 18 : index
    %33 = vector.load %arg0[%c1_34, %c0_35, %c18_36] : memref<2x8x432xf32, #tpu.memory_space<vmem>>, vector<1x8x384xf32>
    %34 = vector.shape_cast %33 : vector<1x8x384xf32> to vector<8x384xf32>
    %c1_37 = arith.constant 1 : index
    %c0_38 = arith.constant 0 : index
    %c19_39 = arith.constant 19 : index
    %35 = vector.load %arg0[%c1_37, %c0_38, %c19_39] : memref<2x8x432xf32, #tpu.memory_space<vmem>>, vector<1x8x384xf32>
    %36 = vector.shape_cast %35 : vector<1x8x384xf32> to vector<8x384xf32>
    %c1_40 = arith.constant 1 : index
    %c0_41 = arith.constant 0 : index
    %c20_42 = arith.constant 20 : index
    %37 = vector.load %arg0[%c1_40, %c0_41, %c20_42] : memref<2x8x432xf32, #tpu.memory_space<vmem>>, vector<1x8x384xf32>
    %38 = vector.shape_cast %37 : vector<1x8x384xf32> to vector<8x384xf32>
    %c1_43 = arith.constant 1 : index
    %c0_44 = arith.constant 0 : index
    %c36_45 = arith.constant 36 : index
    %39 = vector.load %arg0[%c1_43, %c0_44, %c36_45] : memref<2x8x432xf32, #tpu.memory_space<vmem>>, vector<1x8x384xf32>
    %40 = vector.shape_cast %39 : vector<1x8x384xf32> to vector<8x384xf32>
    %c1_46 = arith.constant 1 : index
    %c0_47 = arith.constant 0 : index
    %c37_48 = arith.constant 37 : index
    %41 = vector.load %arg0[%c1_46, %c0_47, %c37_48] : memref<2x8x432xf32, #tpu.memory_space<vmem>>, vector<1x8x384xf32>
    %42 = vector.shape_cast %41 : vector<1x8x384xf32> to vector<8x384xf32>
    %c1_49 = arith.constant 1 : index
    %c0_50 = arith.constant 0 : index
    %c38_51 = arith.constant 38 : index
    %43 = vector.load %arg0[%c1_49, %c0_50, %c38_51] : memref<2x8x432xf32, #tpu.memory_space<vmem>>, vector<1x8x384xf32>
    %44 = vector.shape_cast %43 : vector<1x8x384xf32> to vector<8x384xf32>
    %45 = tpu.concatenate %28, %30, %32, %34, %36, %38, %40, %42, %44 in 0 : vector<8x384xf32>, vector<8x384xf32>, vector<8x384xf32>, vector<8x384xf32>, vector<8x384xf32>, vector<8x384xf32>, vector<8x384xf32>, vector<8x384xf32>, vector<8x384xf32> -> vector<72x384xf32>
    %cst_52 = arith.constant dense<0.000000e+00> : vector<8x384xf32>
    %46 = tpu.matmul %0, %45, %cst_52 {dimension_numbers = #tpu.dot_dimension_numbers<[1], [0], [0], [1], [0, 0, 1, 1], [], []>} : vector<8x72xf32>, vector<72x384xf32>, vector<8x384xf32> -> vector<8x384xf32>
    %47 = vector.broadcast %1 : vector<8x1xf32> to vector<8x384xf32>
    %48 = arith.addf %46, %47 : vector<8x384xf32>
    %c1_53 = arith.constant 1 : index
    %c0_54 = arith.constant 0 : index
    %c0_55 = arith.constant 0 : index
    %49 = vector.load %arg3[%c1_53, %c0_54, %c0_55] : memref<2x8x384xf32, #tpu.memory_space<vmem>>, vector<1x8x384xf32>
    %50 = vector.shape_cast %49 : vector<1x8x384xf32> to vector<8x384xf32>
    %51 = vector.shape_cast %48 : vector<8x384xf32> to vector<1x8x384xf32>
    tpu.vector_store %arg3[%c1_53, %c0_54, %c0_55], %51 {strides = array<i32>} : memref<2x8x384xf32, #tpu.memory_space<vmem>>, vector<1x8x384xf32>,
    return
  }
}

</mosaic_0001>

<llo_original>
// kernel: tpu_custom_call.1
$region0: #{tpu_custom_call.1}
  #allocation0 [shape = 'u32[]', space=smem, size = 0x4, offset = 0x4, fixed_abs, tag = 'smem constant byte address 0x4 - core index']
  #allocation1 [shape = 'u32[72,128]{1,0:T(1,128)}', space=vmem, size = 0x9000, scoped, tag = 'internal scratch']
  %s0 = inlined_call_operand.hbm [shape: f32[2,8,432], index: 0, kind: input, shape index: {}]
  %s1 = inlined_call_operand.vmem [shape: f32[8,72], index: 1, kind: input, shape index: {}]
  %s2 = inlined_call_operand.vmem [shape: f32[8,1], index: 2, kind: input, shape index: {}]
  %s3 = inlined_call_operand.hbm [shape: f32[2,8,384], index: 3, kind: output, shape index: {}]
  %s4 = sld [smem:[#allocation0]]
  $region26: #{tpu_custom_call.1} parent=0
    _
  %s6 = ssub.s32 1, %s4
  %s7 = scalar_select 0, %s6, %s4
  $region1: #{tpu_custom_call.1} parent=0
    #allocation2 [shape = 'u8[32768]{0}', space=vmem, size = 0x8000, scoped, tag = 'input window, operand 0, single buffered']
    #allocation3 [shape = 's32[1]{0}', space=sflag, size = 0x4, scoped, tag = 'scoped memory for tpu_custom_call.1']
    #allocation4 [shape = 's32[1]{0}', space=sflag, size = 0x4, scoped, tag = 'scoped memory for tpu_custom_call.1']
    #allocation5 [shape = 'u8[24576]{0}', space=vmem, size = 0x6000, scoped, tag = 'output window, operand 0, single buffered']
    %8 = vsyncpa [#allocation3], 0
    %9 = vsyncpa [#allocation4], 0
    // Predicated region
    $region2: #{tpu_custom_call.1} parent=1 // pred_check
      _
    $region3: #{tpu_custom_call.1} parent=1 // pred_check_branch
      %11 = sbr.rel (0) target = $region5
    $region4: #{tpu_custom_call.1} parent=1 // pred_region
      %13 = vsyncadd [#allocation3], 0
      %s14 = sshll.u32 %s0, 4
      %s15 = int_to_ptr.hbm [resolvable:$true] %s14
      %s16 = sshll.u32 [#allocation2], 4
      %s17 = int_to_ptr.vmem [resolvable:$true] %s16
      %22 = dma.hbm_to_vmem [thread:$0]  %s15, 1024, %s17, [#allocation3], 512, 512, 32
    $region5: #{tpu_custom_call.1} parent=1 // pred_fallthru
      _
    // Predicated region
    $region6: #{tpu_custom_call.1} parent=1 // pred_check
      _
    $region7: #{tpu_custom_call.1} parent=1 // pred_check_branch
      %24 = sbr.rel (0) target = $region9
    $region8: #{tpu_custom_call.1} parent=1 // pred_region
      _
    $region9: #{tpu_custom_call.1} parent=1 // pred_fallthru
      _
    // Predicated region
    $region10: #{tpu_custom_call.1} parent=1 // pred_check
      _
    $region11: #{tpu_custom_call.1} parent=1 // pred_check_branch
      %26 = sbr.rel (0) target = $region13
    $region12: #{tpu_custom_call.1} parent=1 // pred_region
      _
    $region13: #{tpu_custom_call.1} parent=1 // pred_fallthru
      _
    // Predicated region
    $region14: #{tpu_custom_call.1} parent=1 // pred_check
      _
    $region15: #{tpu_custom_call.1} parent=1 // pred_check_branch
      %28 = sbr.rel (0) target = $region17
    $region16: #{tpu_custom_call.1} parent=1 // pred_region
      %30 = dma.done [#allocation3], 1024
    $region17: #{tpu_custom_call.1} parent=1 // pred_fallthru
      _
    %v31 = vld [vmem:[%s1] sm:$0xff]
    %v32 = vld [vmem:[%s2] sm:$0xff]
    %v33 = vld [vmem:[#allocation2] sm:$0xff]
    %v34 = vld [vmem:[#allocation2 + $0x8] sm:$0xff]
    %v35 = vld [vmem:[#allocation2 + $0x10] sm:$0xff]
    %v36 = vld [vmem:[#allocation2 + $0x18] sm:$0xff]
    %41 = vrot.lane.b32.xlu0 %v33, 127
    %v42 = vpop.permute.xlu0 %41
    %43 = vrot.lane.b32.xlu0 %v34, 127
    %v44 = vpop.permute.xlu0 %43
    %45 = vrot.lane.b32.xlu0 %v35, 127
    %v46 = vpop.permute.xlu0 %45
    %47 = vrot.lane.b32.xlu0 %v36, 127
    %v48 = vpop.permute.xlu0 %47
    %vm49 = vcmask 1039360
    %v50 = vsel %vm49, %v42, %v44
    %v51 = vsel %vm49, %v44, %v46
    %v52 = vsel %vm49, %v46, %v48
    %56 = vrot.lane.b32.xlu0 %v33, 126
    %v57 = vpop.permute.xlu0 %56
    %58 = vrot.lane.b32.xlu0 %v34, 126
    %v59 = vpop.permute.xlu0 %58
    %60 = vrot.lane.b32.xlu0 %v35, 126
    %v61 = vpop.permute.xlu0 %60
    %62 = vrot.lane.b32.xlu0 %v36, 126
    %v63 = vpop.permute.xlu0 %62
    %vm64 = vcmask 1031168
    %v65 = vsel %vm64, %v57, %v59
    %v66 = vsel %vm64, %v59, %v61
    %v67 = vsel %vm64, %v61, %v63
    %71 = vrot.lane.b32.xlu0 %v33, 110
    %v72 = vpop.permute.xlu0 %71
    %73 = vrot.lane.b32.xlu0 %v34, 110
    %v74 = vpop.permute.xlu0 %73
    %75 = vrot.lane.b32.xlu0 %v35, 110
    %v76 = vpop.permute.xlu0 %75
    %77 = vrot.lane.b32.xlu0 %v36, 110
    %v78 = vpop.permute.xlu0 %77
    %vm79 = vcmask 900096
    %v80 = vsel %vm79, %v72, %v74
    %v81 = vsel %vm79, %v74, %v76
    %v82 = vsel %vm79, %v76, %v78
    %86 = vrot.lane.b32.xlu0 %v33, 109
    %v87 = vpop.permute.xlu0 %86
    %88 = vrot.lane.b32.xlu0 %v34, 109
    %v89 = vpop.permute.xlu0 %88
    %90 = vrot.lane.b32.xlu0 %v35, 109
    %v91 = vpop.permute.xlu0 %90
    %92 = vrot.lane.b32.xlu0 %v36, 109
    %v93 = vpop.permute.xlu0 %92
    %vm94 = vcmask 891904
    %v95 = vsel %vm94, %v87, %v89
    %v96 = vsel %vm94, %v89, %v91
    %v97 = vsel %vm94, %v91, %v93
    %101 = vrot.lane.b32.xlu0 %v33, 108
    %v102 = vpop.permute.xlu0 %101
    %103 = vrot.lane.b32.xlu0 %v34, 108
    %v104 = vpop.permute.xlu0 %103
    %105 = vrot.lane.b32.xlu0 %v35, 108
    %v106 = vpop.permute.xlu0 %105
    %107 = vrot.lane.b32.xlu0 %v36, 108
    %v108 = vpop.permute.xlu0 %107
    %vm109 = vcmask 883712
    %v110 = vsel %vm109, %v102, %v104
    %v111 = vsel %vm109, %v104, %v106
    %v112 = vsel %vm109, %v106, %v108
    %116 = vrot.lane.b32.xlu0 %v33, 92
    %v117 = vpop.permute.xlu0 %116
    %118 = vrot.lane.b32.xlu0 %v34, 92
    %v119 = vpop.permute.xlu0 %118
    %120 = vrot.lane.b32.xlu0 %v35, 92
    %v121 = vpop.permute.xlu0 %120
    %122 = vrot.lane.b32.xlu0 %v36, 92
    %v123 = vpop.permute.xlu0 %122
    %vm124 = vcmask 752640
    %v125 = vsel %vm124, %v117, %v119
    %v126 = vsel %vm124, %v119, %v121
    %v127 = vsel %vm124, %v121, %v123
    %131 = vrot.lane.b32.xlu0 %v33, 91
    %v132 = vpop.permute.xlu0 %131
    %133 = vrot.lane.b32.xlu0 %v34, 91
    %v134 = vpop.permute.xlu0 %133
    %135 = vrot.lane.b32.xlu0 %v35, 91
    %v136 = vpop.permute.xlu0 %135
    %137 = vrot.lane.b32.xlu0 %v36, 91
    %v138 = vpop.permute.xlu0 %137
    %vm139 = vcmask 744448
    %v140 = vsel %vm139, %v132, %v134
    %v141 = vsel %vm139, %v134, %v136
    %v142 = vsel %vm139, %v136, %v138
    %146 = vrot.lane.b32.xlu0 %v33, 90
    %v147 = vpop.permute.xlu0 %146
    %148 = vrot.lane.b32.xlu0 %v34, 90
    %v149 = vpop.permute.xlu0 %148
    %150 = vrot.lane.b32.xlu0 %v35, 90
    %v151 = vpop.permute.xlu0 %150
    %152 = vrot.lane.b32.xlu0 %v36, 90
    %v153 = vpop.permute.xlu0 %152
    %vm154 = vcmask 736256
    %v155 = vsel %vm154, %v147, %v149
    %v156 = vsel %vm154, %v149, %v151
    %v157 = vsel %vm154, %v151, %v153
    %162 = vset.pattern.permute.xlu0 0
    %163 = vperm.xlu0 %162, %v32
    %v164 = vpop.permute.xlu0 %163
    %vm166 = vcmask 588800
    %v168 = vsel %vm166, %v31, 0
    %170 = vmatpush.msra.mxu0 0.0
    %171 = vmatpush.msra.mxu0 0.0
    %172 = vmatpush.msra.mxu0 0.0
    %173 = vmatpush.msra.mxu0 0.0
    %174 = vmatpush.msra.mxu0 0.0
    %175 = vmatpush.msra.mxu0 0.0
    %176 = vmatpush.msra.mxu0 0.0
    %177 = vmatpush.msra.mxu0 %v155
    %178 = vmatpush.msra.mxu0 %v140
    %179 = vmatpush.msra.mxu0 %v125
    %180 = vmatpush.msra.mxu0 %v110
    %181 = vmatpush.msra.mxu0 %v95
    %182 = vmatpush.msra.mxu0 %v80
    %183 = vmatpush.msra.mxu0 %v65
    %184 = vmatpush.msra.mxu0 %v50
    %185 = vmatpush.msra.mxu0 %v33
    %186 = vmatmul.f32.gmra.mxu0 %v168
    %v187 = vpop.f32.mrf.mxu0
    %v188 = vadd.f32 %v164, %v187
    %189 = vdwg.mxu0
    %190 = vmatpush.msra.mxu0 0.0
    %191 = vmatpush.msra.mxu0 0.0
    %192 = vmatpush.msra.mxu0 0.0
    %193 = vmatpush.msra.mxu0 0.0
    %194 = vmatpush.msra.mxu0 0.0
    %195 = vmatpush.msra.mxu0 0.0
    %196 = vmatpush.msra.mxu0 0.0
    %197 = vmatpush.msra.mxu0 %v156
    %198 = vmatpush.msra.mxu0 %v141
    %199 = vmatpush.msra.mxu0 %v126
    %200 = vmatpush.msra.mxu0 %v111
    %201 = vmatpush.msra.mxu0 %v96
    %202 = vmatpush.msra.mxu0 %v81
    %203 = vmatpush.msra.mxu0 %v66
    %204 = vmatpush.msra.mxu0 %v51
    %205 = vmatpush.msra.mxu0 %v34
    %206 = vmatmul.f32.gmra.mxu0 %v168
    %v207 = vpop.f32.mrf.mxu0
    %v208 = vadd.f32 %v164, %v207
    %209 = vdwg.mxu0
    %210 = vmatpush.msra.mxu0 0.0
    %211 = vmatpush.msra.mxu0 0.0
    %212 = vmatpush.msra.mxu0 0.0
    %213 = vmatpush.msra.mxu0 0.0
    %214 = vmatpush.msra.mxu0 0.0
    %215 = vmatpush.msra.mxu0 0.0
    %216 = vmatpush.msra.mxu0 0.0
    %217 = vmatpush.msra.mxu0 %v157
    %218 = vmatpush.msra.mxu0 %v142
    %219 = vmatpush.msra.mxu0 %v127
    %220 = vmatpush.msra.mxu0 %v112
    %221 = vmatpush.msra.mxu0 %v97
    %222 = vmatpush.msra.mxu0 %v82
    %223 = vmatpush.msra.mxu0 %v67
    %224 = vmatpush.msra.mxu0 %v52
    %225 = vmatpush.msra.mxu0 %v35
    %226 = vmatmul.f32.gmra.mxu0 %v168
    %v227 = vpop.f32.mrf.mxu0
    %v228 = vadd.f32 %v164, %v227
    %229 = vdwg.mxu0
    %230 = vst [vmem:[#allocation5] sm:$0xff] %v188
    %231 = vst [vmem:[#allocation5 + $0x8] sm:$0xff] %v208
    %232 = vst [vmem:[#allocation5 + $0x10] sm:$0xff] %v228
    %s233 = scalar_lea.vmem [#allocation2], 32
    %v234 = vld [vmem:[%s233] sm:$0xff]
    %v235 = vld [vmem:[%s233 + $0x8] sm:$0xff]
    %v236 = vld [vmem:[%s233 + $0x10] sm:$0xff]
    %v237 = vld [vmem:[%s233 + $0x18] sm:$0xff]
    %242 = vrot.lane.b32.xlu0 %v234, 127
    %v243 = vpop.permute.xlu0 %242
    %244 = vrot.lane.b32.xlu0 %v235, 127
    %v245 = vpop.permute.xlu0 %244
    %246 = vrot.lane.b32.xlu0 %v236, 127
    %v247 = vpop.permute.xlu0 %246
    %248 = vrot.lane.b32.xlu0 %v237, 127
    %v249 = vpop.permute.xlu0 %248
    %v250 = vsel %vm49, %v243, %v245
    %v251 = vsel %vm49, %v245, %v247
    %v252 = vsel %vm49, %v247, %v249
    %256 = vrot.lane.b32.xlu0 %v234, 126
    %v257 = vpop.permute.xlu0 %256
    %258 = vrot.lane.b32.xlu0 %v235, 126
    %v259 = vpop.permute.xlu0 %258
    %260 = vrot.lane.b32.xlu0 %v236, 126
    %v261 = vpop.permute.xlu0 %260
    %262 = vrot.lane.b32.xlu0 %v237, 126
    %v263 = vpop.permute.xlu0 %262
    %v264 = vsel %vm64, %v257, %v259
    %v265 = vsel %vm64, %v259, %v261
    %v266 = vsel %vm64, %v261, %v263
    %270 = vrot.lane.b32.xlu0 %v234, 110
    %v271 = vpop.permute.xlu0 %270
    %272 = vrot.lane.b32.xlu0 %v235, 110
    %v273 = vpop.permute.xlu0 %272
    %274 = vrot.lane.b32.xlu0 %v236, 110
    %v275 = vpop.permute.xlu0 %274
    %276 = vrot.lane.b32.xlu0 %v237, 110
    %v277 = vpop.permute.xlu0 %276
    %v278 = vsel %vm79, %v271, %v273
    %v279 = vsel %vm79, %v273, %v275
    %v280 = vsel %vm79, %v275, %v277
    %284 = vrot.lane.b32.xlu0 %v234, 109
    %v285 = vpop.permute.xlu0 %284
    %286 = vrot.lane.b32.xlu0 %v235, 109
    %v287 = vpop.permute.xlu0 %286
    %288 = vrot.lane.b32.xlu0 %v236, 109
    %v289 = vpop.permute.xlu0 %288
    %290 = vrot.lane.b32.xlu0 %v237, 109
    %v291 = vpop.permute.xlu0 %290
    %v292 = vsel %vm94, %v285, %v287
    %v293 = vsel %vm94, %v287, %v289
    %v294 = vsel %vm94, %v289, %v291
    %298 = vrot.lane.b32.xlu0 %v234, 108
    %v299 = vpop.permute.xlu0 %298
    %300 = vrot.lane.b32.xlu0 %v235, 108
    %v301 = vpop.permute.xlu0 %300
    %302 = vrot.lane.b32.xlu0 %v236, 108
    %v303 = vpop.permute.xlu0 %302
    %304 = vrot.lane.b32.xlu0 %v237, 108
    %v305 = vpop.permute.xlu0 %304
    %v306 = vsel %vm109, %v299, %v301
    %v307 = vsel %vm109, %v301, %v303
    %v308 = vsel %vm109, %v303, %v305
    %312 = vrot.lane.b32.xlu0 %v234, 92
    %v313 = vpop.permute.xlu0 %312
    %314 = vrot.lane.b32.xlu0 %v235, 92
    %v315 = vpop.permute.xlu0 %314
    %316 = vrot.lane.b32.xlu0 %v236, 92
    %v317 = vpop.permute.xlu0 %316
    %318 = vrot.lane.b32.xlu0 %v237, 92
    %v319 = vpop.permute.xlu0 %318
    %v320 = vsel %vm124, %v313, %v315
    %v321 = vsel %vm124, %v315, %v317
    %v322 = vsel %vm124, %v317, %v319
    %326 = vrot.lane.b32.xlu0 %v234, 91
    %v327 = vpop.permute.xlu0 %326
    %328 = vrot.lane.b32.xlu0 %v235, 91
    %v329 = vpop.permute.xlu0 %328
    %330 = vrot.lane.b32.xlu0 %v236, 91
    %v331 = vpop.permute.xlu0 %330
    %332 = vrot.lane.b32.xlu0 %v237, 91
    %v333 = vpop.permute.xlu0 %332
    %v334 = vsel %vm139, %v327, %v329
    %v335 = vsel %vm139, %v329, %v331
    %v336 = vsel %vm139, %v331, %v333
    %340 = vrot.lane.b32.xlu0 %v234, 90
    %v341 = vpop.permute.xlu0 %340
    %342 = vrot.lane.b32.xlu0 %v235, 90
    %v343 = vpop.permute.xlu0 %342
    %344 = vrot.lane.b32.xlu0 %v236, 90
    %v345 = vpop.permute.xlu0 %344
    %346 = vrot.lane.b32.xlu0 %v237, 90
    %v347 = vpop.permute.xlu0 %346
    %v348 = vsel %vm154, %v341, %v343
    %v349 = vsel %vm154, %v343, %v345
    %v350 = vsel %vm154, %v345, %v347
    %354 = vmatpush.msra.mxu0 0.0
    %355 = vmatpush.msra.mxu0 0.0
    %356 = vmatpush.msra.mxu0 0.0
    %357 = vmatpush.msra.mxu0 0.0
    %358 = vmatpush.msra.mxu0 0.0
    %359 = vmatpush.msra.mxu0 0.0
    %360 = vmatpush.msra.mxu0 0.0
    %361 = vmatpush.msra.mxu0 %v348
    %362 = vmatpush.msra.mxu0 %v334
    %363 = vmatpush.msra.mxu0 %v320
    %364 = vmatpush.msra.mxu0 %v306
    %365 = vmatpush.msra.mxu0 %v292
    %366 = vmatpush.msra.mxu0 %v278
    %367 = vmatpush.msra.mxu0 %v264
    %368 = vmatpush.msra.mxu0 %v250
    %369 = vmatpush.msra.mxu0 %v234
    %370 = vmatmul.f32.gmra.mxu0 %v168
    %v371 = vpop.f32.mrf.mxu0
    %v372 = vadd.f32 %v164, %v371
    %373 = vdwg.mxu0
    %374 = vmatpush.msra.mxu0 0.0
    %375 = vmatpush.msra.mxu0 0.0
    %376 = vmatpush.msra.mxu0 0.0
    %377 = vmatpush.msra.mxu0 0.0
    %378 = vmatpush.msra.mxu0 0.0
    %379 = vmatpush.msra.mxu0 0.0
    %380 = vmatpush.msra.mxu0 0.0
    %381 = vmatpush.msra.mxu0 %v349
    %382 = vmatpush.msra.mxu0 %v335
    %383 = vmatpush.msra.mxu0 %v321
    %384 = vmatpush.msra.mxu0 %v307
    %385 = vmatpush.msra.mxu0 %v293
    %386 = vmatpush.msra.mxu0 %v279
    %387 = vmatpush.msra.mxu0 %v265
    %388 = vmatpush.msra.mxu0 %v251
    %389 = vmatpush.msra.mxu0 %v235
    %390 = vmatmul.f32.gmra.mxu0 %v168
    %v391 = vpop.f32.mrf.mxu0
    %v392 = vadd.f32 %v164, %v391
    %393 = vdwg.mxu0
    %394 = vmatpush.msra.mxu0 0.0
    %395 = vmatpush.msra.mxu0 0.0
    %396 = vmatpush.msra.mxu0 0.0
    %397 = vmatpush.msra.mxu0 0.0
    %398 = vmatpush.msra.mxu0 0.0
    %399 = vmatpush.msra.mxu0 0.0
    %400 = vmatpush.msra.mxu0 0.0
    %401 = vmatpush.msra.mxu0 %v350
    %402 = vmatpush.msra.mxu0 %v336
    %403 = vmatpush.msra.mxu0 %v322
    %404 = vmatpush.msra.mxu0 %v308
    %405 = vmatpush.msra.mxu0 %v294
    %406 = vmatpush.msra.mxu0 %v280
    %407 = vmatpush.msra.mxu0 %v266
    %408 = vmatpush.msra.mxu0 %v252
    %409 = vmatpush.msra.mxu0 %v236
    %410 = vmatmul.f32.gmra.mxu0 %v168
    %v411 = vpop.f32.mrf.mxu0
    %v412 = vadd.f32 %v164, %v411
    %413 = vdwg.mxu0
    %s414 = scalar_lea.vmem [#allocation5], 24
    %415 = vst [vmem:[%s414] sm:$0xff] %v372
    %416 = vst [vmem:[%s414 + $0x8] sm:$0xff] %v392
    %417 = vst [vmem:[%s414 + $0x10] sm:$0xff] %v412
    // Predicated region
    $region18: #{tpu_custom_call.1} parent=1 // pred_check
      _
    $region19: #{tpu_custom_call.1} parent=1 // pred_check_branch
      %419 = sbr.rel (0) target = $region21
    $region20: #{tpu_custom_call.1} parent=1 // pred_region
      %421 = vsyncadd [#allocation4], 0
      %s422 = sshll.u32 [#allocation5], 4
      %s423 = int_to_ptr.vmem [resolvable:$true] %s422
      %s424 = sshll.u32 %s3, 4
      %s425 = int_to_ptr.hbm [resolvable:$true] %s424
      %430 = dma.vmem_to_hbm [thread:$0]  %s423, 768, %s425, [#allocation4], 384, 384, 24
    $region21: #{tpu_custom_call.1} parent=1 // pred_fallthru
      _
    // Predicated region
    $region22: #{tpu_custom_call.1} parent=1 // pred_check
      _
    $region23: #{tpu_custom_call.1} parent=1 // pred_check_branch
      %432 = sbr.rel (0) target = $region25
    $region24: #{tpu_custom_call.1} parent=1 // pred_region
      %434 = dma.done [#allocation4], 768
    $region25: #{tpu_custom_call.1} parent=1 // pred_fallthru
      _
    %435 = vsyncpa [#allocation3], 1
    %436 = vsyncpa [#allocation4], 1

</llo_original>
